<compile_context>
chip_gen: v6e
topology: v6e:2x2x1
jax: 0.10.0
libtpu: 0.0.40
codegen_flags: <defaults>
</compile_context>

<pallas_src>
import math
import functools

import jax
import jax.numpy as jnp
from jax import lax
from jax.experimental import pallas as pl
from jax.experimental.pallas import tpu as pltpu


# ----------------------------------------------------------------------------
# Shared math helpers (used inside kernels and in the pure-JAX reference)
# ----------------------------------------------------------------------------
def _gelu(x):
    # tanh-approximate GELU (torch default is erf-exact; difference < 1e-3)
    c = math.sqrt(2.0 / math.pi)
    return 0.5 * x * (1.0 + jnp.tanh(c * (x + 0.044715 * x * x * x)))


def _layer_norm(h, g, b, eps: float = 1e-5):
    mu = jnp.mean(h, axis=-1, keepdims=True)
    var = jnp.mean(jnp.square(h - mu), axis=-1, keepdims=True)
    return (h - mu) * lax.rsqrt(var + eps) * g + b


def _discretize_zoh(params):
    """Lambda_bar = exp(Lambda*dt);  B_bar = (Lambda_bar - 1)/Lambda * B  (complex, split re/im)."""
    lam_re, lam_im = params["lambda_re"], params["lambda_im"]
    step = jnp.exp(params["log_step"])
    zr, zi = lam_re * step, lam_im * step
    mag = jnp.exp(zr)
    abar_re = mag * jnp.cos(zi)
    abar_im = mag * jnp.sin(zi)
    nr, ni = abar_re - 1.0, abar_im
    den = lam_re * lam_re + lam_im * lam_im
    g_re = (nr * lam_re + ni * lam_im) / den
    g_im = (ni * lam_re - nr * lam_im) / den
    bbar_re = g_re[:, None] * params["b_re"] - g_im[:, None] * params["b_im"]
    bbar_im = g_re[:, None] * params["b_im"] + g_im[:, None] * params["b_re"]
    return abar_re, abar_im, bbar_re, bbar_im


# ----------------------------------------------------------------------------
# Stage 1: in_linear + attn LayerNorm + fused (re|im) B_bar projection
#          (row-parallel over M = L*B rows, time-major order)
# ----------------------------------------------------------------------------
def _stage1_kernel(x_ref, win_ref, g1_ref, b1_ref, bbar2_ref, fx_ref, bu_ref):
    h = jnp.dot(x_ref[...], win_ref[...], preferred_element_type=jnp.float32)
    fx = _layer_norm(h, g1_ref[...], b1_ref[...])
    fx_ref[...] = fx.astype(fx_ref.dtype)
    # single matmul producing [Bu_re | Bu_im] packed on the lane axis
    bu_ref[...] = jnp.dot(fx, bbar2_ref[...],
                          preferred_element_type=jnp.float32).astype(bu_ref.dtype)


# ----------------------------------------------------------------------------
# Stage 2: complex diagonal recurrence, time-chunked.
#   grid = (cdiv(L, T),)  block = (T, B, 2P), state [re | im] packed on lanes,
#   carried in vregs across the unrolled in-kernel loop and persisted in VMEM
#   scratch across sequential grid chunks.
# ----------------------------------------------------------------------------
def _s5_scan_kernel(bu_ref, adiag_ref, across_ref, xs_ref, st_ref,
                    *, chunk: int, state_dim: int):
    c = pl.program_id(0)

    @pl.when(c == 0)
    def _():
        st_ref[...] = jnp.zeros_like(st_ref)

    P = state_dim
    # Hoist Lambda_bar broadcasts out of the time loop (JAX does not CSE them).
    a_d = jnp.broadcast_to(adiag_ref[...], st_ref.shape)   # [ar | ar]
    a_c = jnp.broadcast_to(across_ref[...], st_ref.shape)  # [-ai | ai]

    def body(t, s):
        # s = [sr | si]; swapped = [si | sr]
        s_sw = jnp.concatenate([s[:, P:], s[:, :P]], axis=-1)
        # new_re = ar*sr - ai*si + bu_re ; new_im = ar*si + ai*sr + bu_im
        new = a_d * s + a_c * s_sw + bu_ref[t]
        xs_ref[t] = new.astype(xs_ref.dtype)
        return new

    final = lax.fori_loop(0, chunk, body, st_ref[...],
                          unroll=True if chunk <= 16 else 8)
    st_ref[...] = final


# ----------------------------------------------------------------------------
# Stage 3: fused C projection (packed re/im) + D feedthrough + gelu residual +
#          ff LayerNorm + GEGLU FF (split value/gate weights) + fused
#          (W_dec @ W_out) tail + out_linear          (row-parallel)
# ----------------------------------------------------------------------------
def _stage3_kernel(xs_ref, fx_ref, c2_ref, d_ref, g2_ref, b2_ref,
                   wv_ref, wg_ref, wdo_ref, wo_ref, y_ref):
    fx = fx_ref[...]
    # ys = 2*(xs_re @ C_re^T - xs_im @ C_im^T) + d*fx, scale/sign folded into c2
    ys = jnp.dot(xs_ref[...], c2_ref[...],
                 preferred_element_type=jnp.float32) + d_ref[...] * fx
    h2 = _gelu(ys) + fx                                   # residual = attn_norm output
    fx2 = _layer_norm(h2, g2_ref[...], b2_ref[...])
    val = jnp.dot(fx2, wv_ref[...], preferred_element_type=jnp.float32)
    gate = jnp.dot(fx2, wg_ref[...], preferred_element_type=jnp.float32)
    gl = val * _gelu(gate)                                # GEGLU
    # y = (gl @ W_dec^T + fx2) @ W_out^T = gl @ (W_dec^T W_out^T) + fx2 @ W_out^T
    y = (jnp.dot(gl, wdo_ref[...], preferred_element_type=jnp.float32)
         + jnp.dot(fx2, wo_ref[...], preferred_element_type=jnp.float32))
    y_ref[...] = y.astype(y_ref.dtype)


# ----------------------------------------------------------------------------
# Forward wrapper
# ----------------------------------------------------------------------------
def meta_s5_block_forward(x, params, *, bidir: bool = False,
                          row_tile: int = 512, time_chunk: int = 128):
    """x: (B, L, d_input) float32 -> (B, L, d_input) float32."""
    if bidir:
        # TODO(synk): bidir=True (reverse-time scan + C of shape (dim, 2P)) not implemented.
        raise NotImplementedError("bidir=True not implemented")

    B, L, d_input = x.shape
    dim = params["w_in"].shape[0]
    P = params["lambda_re"].shape[0]
    M = L * B
    P2 = 2 * P
    f32 = jnp.float32

    abar_re, abar_im, bbar_re, bbar_im = _discretize_zoh(params)

    # ---- host-side weight prep (pure parameter work) ----
    win_t = params["w_in"].T                                        # (d_input, dim)
    bbar2_t = jnp.concatenate([bbar_re.T, bbar_im.T], axis=1)       # (dim, 2P)
    c2 = jnp.concatenate([2.0 * params["c_re"].T,
                          -2.0 * params["c_im"].T], axis=0)         # (2P, dim)
    wenc_val_t = params["w_enc"][:dim].T                            # (dim, dim)
    wenc_gate_t = params["w_enc"][dim:].T                           # (dim, dim)
    wout_t = params["w_out"].T                                      # (dim, d_input)
    wdec_wout_t = params["w_dec"].T @ wout_t                        # (dim, d_input)
    g1 = params["g1"].reshape(1, dim)
    b1 = params["b1"].reshape(1, dim)
    g2 = params["g2"].reshape(1, dim)
    b2 = params["b2"].reshape(1, dim)
    dvec = params["d"].reshape(1, dim)
    a_diag = jnp.concatenate([abar_re, abar_re]).reshape(1, P2)     # [ar | ar]
    a_cross = jnp.concatenate([-abar_im, abar_im]).reshape(1, P2)   # [-ai | ai]

    # ---- time-major row order: one d_input-wide transpose in, one out ----
    x2d = jnp.transpose(x, (1, 0, 2)).reshape(M, d_input)

    tm = M if M <= row_tile else row_tile
    grid_m = pl.cdiv(M, tm)
    vmem_cap = 32 * 1024 * 1024   # safe on v5e/v6e/v7x; raises v5e's 16 MiB default
    cparams_par = pltpu.CompilerParams(dimension_semantics=("parallel",),
                                       vmem_limit_bytes=vmem_cap)

    def full(a):  # whole-array resident block (small weights / norm params)
        return pl.BlockSpec(a.shape, lambda i, _n=a.ndim: (0,) * _n)

    # ---- stage 1: in_linear + LayerNorm + packed B_bar projection ----
    fx, bu = pl.pallas_call(
        _stage1_kernel,
        out_shape=(jax.ShapeDtypeStruct((M, dim), f32),
                   jax.ShapeDtypeStruct((M, P2), f32)),
        grid=(grid_m,),
        in_specs=[pl.BlockSpec((tm, d_input), lambda i: (i, 0)),
                  full(win_t), full(g1), full(b1), full(bbar2_t)],
        out_specs=(pl.BlockSpec((tm, dim), lambda i: (i, 0)),
                   pl.BlockSpec((tm, P2), lambda i: (i, 0))),
        compiler_params=cparams_par,
    )(x2d, win_t, g1, b1, bbar2_t)

    # ---- stage 2: time-chunked sequential scan (no HBM transposes needed) ----
    T = L if L <= time_chunk else time_chunk
    n_chunks = pl.cdiv(L, T)
    bu3 = bu.reshape(L, B, P2)          # pure reshape (rows already time-major)

    scan_kernel = functools.partial(_s5_scan_kernel, chunk=T, state_dim=P)
    xs3 = pl.pallas_call(
        scan_kernel,
        out_shape=jax.ShapeDtypeStruct((L, B, P2), f32),
        grid=(n_chunks,),
        in_specs=[pl.BlockSpec((T, B, P2), lambda c: (c, 0, 0)),
                  full(a_diag), full(a_cross)],
        out_specs=pl.BlockSpec((T, B, P2), lambda c: (c, 0, 0)),
        scratch_shapes=[pltpu.VMEM((B, P2), f32)],
        compiler_params=pltpu.CompilerParams(dimension_semantics=("arbitrary",),
                                             vmem_limit_bytes=vmem_cap),
    )(bu3, a_diag, a_cross)
    # TODO(synk): on v7x a leading parallel grid axis over batch halves would
    # use both TensorCores for the scan; omitted to keep the scan path simple.

    xs2d = xs3.reshape(M, P2)           # pure reshape

    # ---- stage 3: row-parallel fused output path ----
    y2d = pl.pallas_call(
        _stage3_kernel,
        out_shape=jax.ShapeDtypeStruct((M, d_input), f32),
        grid=(grid_m,),
        in_specs=[pl.BlockSpec((tm, P2), lambda i: (i, 0)),
                  pl.BlockSpec((tm, dim), lambda i: (i, 0)),
                  full(c2), full(dvec), full(g2), full(b2),
                  full(wenc_val_t), full(wenc_gate_t),
                  full(wdec_wout_t), full(wout_t)],
        out_specs=pl.BlockSpec((tm, d_input), lambda i: (i, 0)),
        compiler_params=cparams_par,
    )(xs2d, fx, c2, dvec, g2, b2, wenc_val_t, wenc_gate_t, wdec_wout_t, wout_t)

    return jnp.transpose(y2d.reshape(L, B, d_input), (1, 0, 2))


# ----------------------------------------------------------------------------
# Pure-JAX reference (same math, no Pallas) for correctness checking
# ----------------------------------------------------------------------------
def meta_s5_block_reference(x, params):
    B, L, _ = x.shape
    dim = params["w_in"].shape[0]
    P = params["lambda_re"].shape[0]
    abar_re, abar_im, bbar_re, bbar_im = _discretize_zoh(params)

    h = x @ params["w_in"].T
    fx = _layer_norm(h, params["g1"], params["b1"])
    bu_re = fx @ bbar_re.T                                # (B, L, P)
    bu_im = fx @ bbar_im.T

    def step(carry, bu):
        xr, xi = carry
        br, bi = bu
        nr = abar_re * xr - abar_im * xi + br
        ni = abar_re * xi + abar_im * xr + bi
        return (nr, ni), (nr, ni)

    init = (jnp.zeros((B, P), jnp.float32), jnp.zeros((B, P), jnp.float32))
    _, (xs_re, xs_im) = lax.scan(step, init,
                                 (bu_re.transpose(1, 0, 2), bu_im.transpose(1, 0, 2)))
    xs_re = xs_re.transpose(1, 0, 2)
    xs_im = xs_im.transpose(1, 0, 2)

    ys = 2.0 * (xs_re @ params["c_re"].T - xs_im @ params["c_im"].T) + params["d"] * fx
    h2 = _gelu(ys) + fx
    fx2 = _layer_norm(h2, params["g2"], params["b2"])
    uu = fx2 @ params["w_enc"].T
    gl = uu[..., :dim] * _gelu(uu[..., dim:])
    h3 = gl @ params["w_dec"].T + fx2
    return h3 @ params["w_out"].T


# ----------------------------------------------------------------------------
# Deterministic parameter construction (plain JAX glue, mirrors __init__)
# ----------------------------------------------------------------------------
def init_meta_s5_params(key, d_input, dim, state_dim):
    P = state_dim
    f32 = jnp.float32
    ks = jax.random.split(key, 10)

    def lin(k, shape, fan_in):
        return jax.random.normal(k, shape, f32) / math.sqrt(fan_in)

    return dict(
        w_in=lin(ks[0], (dim, d_input), d_input),
        g1=jnp.ones((dim,), f32), b1=jnp.zeros((dim,), f32),
        # S5 diagonal SSM params (negative real part, linear imaginary ramp)
        lambda_re=-0.5 * jnp.ones((P,), f32),
        lambda_im=math.pi * jnp.arange(P, dtype=f32),
        b_re=lin(ks[1], (P, dim), dim),
        b_im=lin(ks[2], (P, dim), dim),
        c_re=lin(ks[3], (dim, P), P),
        c_im=lin(ks[4], (dim, P), P),
        d=jax.random.normal(ks[5], (dim,), f32),
        log_step=jax.random.uniform(ks[6], (P,), f32,
                                    minval=math.log(1e-3), maxval=math.log(1e-1)),
        g2=jnp.ones((dim,), f32), b2=jnp.zeros((dim,), f32),
        w_enc=lin(ks[7], (2 * dim, dim), dim),
        w_dec=lin(ks[8], (dim, dim), dim),
        w_out=lin(ks[9], (d_input, dim), dim),
    )


# ----------------------------------------------------------------------------
# Main
# ----------------------------------------------------------------------------
if __name__ == "__main__":
    BATCH, SEQ = 2, 8
    D_INPUT, DIM, STATE_DIM = 16, 32, 32
    BIDIR = False   # TODO(synk): bidir=True path not implemented (reverse scan + wide C)

    key = jax.random.PRNGKey(0)
    k_param, k_x = jax.random.split(key)
    params = init_meta_s5_params(k_param, D_INPUT, DIM, STATE_DIM)
    x = jax.random.normal(k_x, (BATCH, SEQ, D_INPUT), dtype=jnp.float32)

    y = meta_s5_block_forward(x, params, bidir=BIDIR)
    y = jax.block_until_ready(y)

    y_ref = meta_s5_block_reference(x, params)

    assert y.shape == (BATCH, SEQ, D_INPUT) and y.dtype == jnp.float32
    assert bool(jnp.all(jnp.isfinite(y)))
    max_err = float(jnp.max(jnp.abs(y - y_ref)))
    assert jnp.allclose(y, y_ref, atol=2e-3, rtol=2e-3), max_err

    print("KERNEL_OK")
</pallas_src>

<mosaic_0001>
module attributes {stable_mosaic.version = 11 : i64} {
  func.func @_stage1_kernel(%arg0: i32, %arg1: memref<16x16xf32, #tpu.memory_space<vmem>>, %arg2: memref<16x32xf32, #tpu.memory_space<vmem>>, %arg3: memref<1x32xf32, #tpu.memory_space<vmem>>, %arg4: memref<1x32xf32, #tpu.memory_space<vmem>>, %arg5: memref<32x64xf32, #tpu.memory_space<vmem>>, %arg6: memref<16x32xf32, #tpu.memory_space<vmem>>, %arg7: memref<16x64xf32, #tpu.memory_space<vmem>>) attributes {dimension_semantics = [#tpu.dimension_semantics<parallel>], iteration_bounds = array<i64: 1>, scalar_prefetch = 0 : i64, scratch_operands = 0 : i64, tpu.core_type = #tpu.core_type<tc>, window_params = [{transform_indices = @transform_0, window_bounds = array<i64: 16, 16>}, {pipeline_mode = #tpu.pipeline_mode<synchronous>, transform_indices = @transform_1, window_bounds = array<i64: 16, 32>}, {pipeline_mode = #tpu.pipeline_mode<synchronous>, transform_indices = @transform_2, window_bounds = array<i64: 1, 32>}, {pipeline_mode = #tpu.pipeline_mode<synchronous>, transform_indices = @transform_3, window_bounds = array<i64: 1, 32>}, {pipeline_mode = #tpu.pipeline_mode<synchronous>, transform_indices = @transform_4, window_bounds = array<i64: 32, 64>}, {transform_indices = @transform_5, window_bounds = array<i64: 16, 32>}, {transform_indices = @transform_6, window_bounds = array<i64: 16, 64>}]} {
    %c0 = arith.constant 0 : index
    %c0_0 = arith.constant 0 : index
    %0 = vector.load %arg1[%c0, %c0_0] : memref<16x16xf32, #tpu.memory_space<vmem>>, vector<16x16xf32>
    %c0_1 = arith.constant 0 : index
    %c0_2 = arith.constant 0 : index
    %1 = vector.load %arg2[%c0_1, %c0_2] : memref<16x32xf32, #tpu.memory_space<vmem>>, vector<16x32xf32>
    %cst = arith.constant dense<0.000000e+00> : vector<16x32xf32>
    %2 = tpu.matmul %0, %1, %cst {dimension_numbers = #tpu.dot_dimension_numbers<[1], [0], [0], [1], [0, 0, 1, 1], [], []>} : vector<16x16xf32>, vector<16x32xf32>, vector<16x32xf32> -> vector<16x32xf32>
    %c0_3 = arith.constant 0 : index
    %c0_4 = arith.constant 0 : index
    %3 = vector.load %arg3[%c0_3, %c0_4] : memref<1x32xf32, #tpu.memory_space<vmem>>, vector<1x32xf32>
    %c0_5 = arith.constant 0 : index
    %c0_6 = arith.constant 0 : index
    %4 = vector.load %arg4[%c0_5, %c0_6] : memref<1x32xf32, #tpu.memory_space<vmem>>, vector<1x32xf32>
    %cst_7 = arith.constant dense<0.000000e+00> : vector<16xf32>
    %5 = vector.multi_reduction <add>, %2, %cst_7 [1] : vector<16x32xf32> to vector<16xf32>
    %6 = vector.shape_cast %5 : vector<16xf32> to vector<16x1xf32>
    %cst_8 = arith.constant 3.200000e+01 : f32
    %7 = vector.broadcast %cst_8 : f32 to vector<16x1xf32>
    %8 = arith.divf %6, %7 : vector<16x1xf32>
    %9 = vector.broadcast %8 : vector<16x1xf32> to vector<16x32xf32>
    %10 = arith.subf %2, %9 : vector<16x32xf32>
    %11 = arith.mulf %10, %10 : vector<16x32xf32>
    %cst_9 = arith.constant dense<0.000000e+00> : vector<16xf32>
    %12 = vector.multi_reduction <add>, %11, %cst_9 [1] : vector<16x32xf32> to vector<16xf32>
    %13 = vector.shape_cast %12 : vector<16xf32> to vector<16x1xf32>
    %cst_10 = arith.constant 3.200000e+01 : f32
    %14 = vector.broadcast %cst_10 : f32 to vector<16x1xf32>
    %15 = arith.divf %13, %14 : vector<16x1xf32>
    %16 = vector.broadcast %8 : vector<16x1xf32> to vector<16x32xf32>
    %17 = arith.subf %2, %16 : vector<16x32xf32>
    %cst_11 = arith.constant 9.99999974E-6 : f32
    %18 = vector.broadcast %cst_11 : f32 to vector<16x1xf32>
    %19 = arith.addf %15, %18 : vector<16x1xf32>
    %20 = math.rsqrt %19 : vector<16x1xf32>
    %21 = vector.broadcast %20 : vector<16x1xf32> to vector<16x32xf32>
    %22 = arith.mulf %17, %21 : vector<16x32xf32>
    %23 = vector.broadcast %3 : vector<1x32xf32> to vector<16x32xf32>
    %24 = arith.mulf %22, %23 : vector<16x32xf32>
    %25 = vector.broadcast %4 : vector<1x32xf32> to vector<16x32xf32>
    %26 = arith.addf %24, %25 : vector<16x32xf32>
    %c0_12 = arith.constant 0 : index
    %c0_13 = arith.constant 0 : index
    %27 = vector.load %arg6[%c0_12, %c0_13] : memref<16x32xf32, #tpu.memory_space<vmem>>, vector<16x32xf32>
    tpu.vector_store %arg6[%c0_12, %c0_13], %26 {strides = array<i32>} : memref<16x32xf32, #tpu.memory_space<vmem>>, vector<16x32xf32>,
    %c0_14 = arith.constant 0 : index
    %c0_15 = arith.constant 0 : index
    %28 = vector.load %arg5[%c0_14, %c0_15] : memref<32x64xf32, #tpu.memory_space<vmem>>, vector<32x64xf32>
    %cst_16 = arith.constant dense<0.000000e+00> : vector<16x64xf32>
    %29 = tpu.matmul %26, %28, %cst_16 {dimension_numbers = #tpu.dot_dimension_numbers<[1], [0], [0], [1], [0, 0, 1, 1], [], []>} : vector<16x32xf32>, vector<32x64xf32>, vector<16x64xf32> -> vector<16x64xf32>
    %c0_17 = arith.constant 0 : index
    %c0_18 = arith.constant 0 : index
    %30 = vector.load %arg7[%c0_17, %c0_18] : memref<16x64xf32, #tpu.memory_space<vmem>>, vector<16x64xf32>
    tpu.vector_store %arg7[%c0_17, %c0_18], %29 {strides = array<i32>} : memref<16x64xf32, #tpu.memory_space<vmem>>, vector<16x64xf32>,
    return
  }
  func.func @transform_0(%arg0: i32) -> (i32, i32) {
    %c0_i32 = arith.constant 0 : i32
    %c0_i32_0 = arith.constant 0 : i32
    return %arg0, %c0_i32 : i32, i32
  }
  func.func @transform_1(%arg0: i32) -> (i32, i32) {
    %c0_i32 = arith.constant 0 : i32
    %c0_i32_0 = arith.constant 0 : i32
    %c0_i32_1 = arith.constant 0 : i32
    return %c0_i32, %c0_i32_0 : i32, i32
  }
  func.func @transform_2(%arg0: i32) -> (i32, i32) {
    %c0_i32 = arith.constant 0 : i32
    %c0_i32_0 = arith.constant 0 : i32
    %c0_i32_1 = arith.constant 0 : i32
    return %c0_i32, %c0_i32_0 : i32, i32
  }
  func.func @transform_3(%arg0: i32) -> (i32, i32) {
    %c0_i32 = arith.constant 0 : i32
    %c0_i32_0 = arith.constant 0 : i32
    %c0_i32_1 = arith.constant 0 : i32
    return %c0_i32, %c0_i32_0 : i32, i32
  }
  func.func @transform_4(%arg0: i32) -> (i32, i32) {
    %c0_i32 = arith.constant 0 : i32
    %c0_i32_0 = arith.constant 0 : i32
    %c0_i32_1 = arith.constant 0 : i32
    return %c0_i32, %c0_i32_0 : i32, i32
  }
  func.func @transform_5(%arg0: i32) -> (i32, i32) {
    %c0_i32 = arith.constant 0 : i32
    %c0_i32_0 = arith.constant 0 : i32
    return %arg0, %c0_i32 : i32, i32
  }
  func.func @transform_6(%arg0: i32) -> (i32, i32) {
    %c0_i32 = arith.constant 0 : i32
    %c0_i32_0 = arith.constant 0 : i32
    return %arg0, %c0_i32 : i32, i32
  }
}

</mosaic_0001>

<llo_original>
// kernel: tpu_custom_call.1
$region0: #{tpu_custom_call.1}
  #allocation0 [shape = 'u32[]', space=smem, size = 0x4, offset = 0x4, fixed_abs, tag = 'smem constant byte address 0x4 - core index']
  #allocation1 [shape = 'u32[144,128]{1,0:T(1,128)}', space=vmem, size = 0x12000, scoped, tag = 'internal scratch']
  %s0 = inlined_call_operand.hbm [shape: f32[16,16], index: 0, kind: input, shape index: {}]
  %s1 = inlined_call_operand.hbm [shape: f32[16,32], index: 1, kind: input, shape index: {}]
  %s2 = inlined_call_operand.vmem [shape: f32[1,32], index: 2, kind: input, shape index: {}]
  %s3 = inlined_call_operand.vmem [shape: f32[1,32], index: 3, kind: input, shape index: {}]
  %s4 = inlined_call_operand.hbm [shape: f32[32,64], index: 4, kind: input, shape index: {}]
  %s5 = inlined_call_operand.hbm [shape: f32[16,32], index: 5, kind: output, shape index: {0}]
  %s6 = inlined_call_operand.hbm [shape: f32[16,64], index: 6, kind: output, shape index: {1}]
  %7 = xla_tuple %s5, %s6
  %s8 = sld [smem:[#allocation0]]
  $region50: #{tpu_custom_call.1} parent=0
    _
  %s10 = ssub.s32 1, %s8
  %s11 = scalar_select 0, %s10, %s8
  $region1: #{tpu_custom_call.1} parent=0
    #allocation2 [shape = 'u8[8192]{0}', space=vmem, size = 0x2000, scoped, tag = 'input window, operand 0, single buffered']
    #allocation3 [shape = 's32[1]{0}', space=sflag, size = 0x4, scoped, tag = 'scoped memory for tpu_custom_call.1']
    #allocation4 [shape = 's32[1]{0}', space=sflag, size = 0x4, scoped, tag = 'scoped memory for tpu_custom_call.1']
    #allocation5 [shape = 'u8[8192]{0}', space=vmem, size = 0x2000, scoped, tag = 'input window, operand 1, single buffered']
    #allocation6 [shape = 's32[1]{0}', space=sflag, size = 0x4, scoped, tag = 'scoped memory for tpu_custom_call.1']
    #allocation7 [shape = 'u8[16384]{0}', space=vmem, size = 0x4000, scoped, tag = 'input window, operand 4, single buffered']
    #allocation8 [shape = 'u8[8192]{0}', space=vmem, size = 0x2000, scoped, tag = 'output window, operand 0, single buffered']
    #allocation9 [shape = 'u8[8192]{0}', space=vmem, size = 0x2000, scoped, tag = 'output window, operand 1, single buffered']
    #allocation10 [shape = 's32[1]{0}', space=sflag, size = 0x4, scoped, tag = 'scoped memory for tpu_custom_call.1']
    %12 = vsyncpa [#allocation3], 0
    %13 = vsyncpa [#allocation6], 0
    %14 = vsyncpa [#allocation4], 0
    %15 = vsyncpa [#allocation10], 0
    // Predicated region
    $region2: #{tpu_custom_call.1} parent=1 // pred_check
      _
    $region3: #{tpu_custom_call.1} parent=1 // pred_check_branch
      %17 = sbr.rel (0) target = $region5
    $region4: #{tpu_custom_call.1} parent=1 // pred_region
      %s19 = ssub.s32 256, 256
      %20 = vsyncadd [#allocation3], %s19
      %s21 = sshll.u32 [#allocation2], 4
      %s22 = int_to_ptr.vmem [resolvable:$true] %s21
      %27 = dma.hbm_to_vmem [thread:$0]  %s0, 256, %s22, [#allocation3], 128, 128, 8
    $region5: #{tpu_custom_call.1} parent=1 // pred_fallthru
      _
    // Predicated region
    $region6: #{tpu_custom_call.1} parent=1 // pred_check
      _
    $region7: #{tpu_custom_call.1} parent=1 // pred_check_branch
      %29 = sbr.rel (0) target = $region9
    $region8: #{tpu_custom_call.1} parent=1 // pred_region
      %s31 = ssub.s32 256, 256
      %32 = vsyncadd [#allocation6], %s31
      %s33 = sshll.u32 [#allocation5], 4
      %s34 = int_to_ptr.vmem [resolvable:$true] %s33
      %39 = dma.hbm_to_vmem [thread:$0]  %s1, 256, %s34, [#allocation6], 128, 128, 8
    $region9: #{tpu_custom_call.1} parent=1 // pred_fallthru
      _
    // Predicated region
    $region10: #{tpu_custom_call.1} parent=1 // pred_check
      _
    $region11: #{tpu_custom_call.1} parent=1 // pred_check_branch
      %41 = sbr.rel (0) target = $region13
    $region12: #{tpu_custom_call.1} parent=1 // pred_region
      _
    $region13: #{tpu_custom_call.1} parent=1 // pred_fallthru
      _
    // Predicated region
    $region14: #{tpu_custom_call.1} parent=1 // pred_check
      _
    $region15: #{tpu_custom_call.1} parent=1 // pred_check_branch
      %43 = sbr.rel (0) target = $region17
    $region16: #{tpu_custom_call.1} parent=1 // pred_region
      _
    $region17: #{tpu_custom_call.1} parent=1 // pred_fallthru
      _
    // Predicated region
    $region18: #{tpu_custom_call.1} parent=1 // pred_check
      _
    $region19: #{tpu_custom_call.1} parent=1 // pred_check_branch
      %45 = sbr.rel (0) target = $region21
    $region20: #{tpu_custom_call.1} parent=1 // pred_region
      %s47 = ssub.s32 512, 512
      %48 = vsyncadd [#allocation6], %s47
      %s49 = sshll.u32 [#allocation7], 4
      %s50 = int_to_ptr.vmem [resolvable:$true] %s49
      %55 = dma.hbm_to_vmem [thread:$0]  %s4, 512, %s50, [#allocation6], 128, 128, 8
    $region21: #{tpu_custom_call.1} parent=1 // pred_fallthru
      _
    // Predicated region
    $region22: #{tpu_custom_call.1} parent=1 // pred_check
      _
    $region23: #{tpu_custom_call.1} parent=1 // pred_check_branch
      %57 = sbr.rel (0) target = $region25
    $region24: #{tpu_custom_call.1} parent=1 // pred_region
      %58 = dma.done [#allocation3], 256
    $region25: #{tpu_custom_call.1} parent=1 // pred_fallthru
      _
    // Predicated region
    $region26: #{tpu_custom_call.1} parent=1 // pred_check
      _
    $region27: #{tpu_custom_call.1} parent=1 // pred_check_branch
      %60 = sbr.rel (0) target = $region29
    $region28: #{tpu_custom_call.1} parent=1 // pred_region
      %61 = dma.done [#allocation6], 256
    $region29: #{tpu_custom_call.1} parent=1 // pred_fallthru
      _
    // Predicated region
    $region30: #{tpu_custom_call.1} parent=1 // pred_check
      _
    $region31: #{tpu_custom_call.1} parent=1 // pred_check_branch
      %63 = sbr.rel (0) target = $region33
    $region32: #{tpu_custom_call.1} parent=1 // pred_region
      %64 = dma.done [#allocation6], 512
    $region33: #{tpu_custom_call.1} parent=1 // pred_fallthru
      _
    %v65 = vld [vmem:[#allocation2] sm:$0xff]
    %v66 = vld [vmem:[#allocation2 + $0x8] sm:$0xff]
    %v67 = vld [vmem:[#allocation5] sm:$0xff]
    %v68 = vld [vmem:[#allocation5 + $0x8] sm:$0xff]
    %vm69 = vcmask 130048
    %v71 = vsel %vm69, %v65, 0
    %v74 = vsel %vm69, %v66, 0
    %76 = vmatprep.subr.mxu0 0.0
    %77 = vmatpush1.msra.mxu0 0.0
    %78 = vmatprep.subr.mxu0 0.0
    %79 = vmatpush1.msra.mxu0 0.0
    %80 = vmatprep.subr.mxu0 0.0
    %81 = vmatpush1.msra.mxu0 0.0
    %82 = vmatprep.subr.mxu0 0.0
    %83 = vmatpush1.msra.mxu0 0.0
    %84 = vmatprep.subr.mxu0 0.0
    %85 = vmatpush1.msra.mxu0 0.0
    %86 = vmatprep.subr.mxu0 0.0
    %87 = vmatpush1.msra.mxu0 0.0
    %88 = vmatprep.subr.mxu0 0.0
    %89 = vmatpush1.msra.mxu0 0.0
    %90 = vmatprep.subr.mxu0 0.0
    %91 = vmatpush1.msra.mxu0 0.0
    %92 = vmatprep.subr.mxu0 0.0
    %93 = vmatpush1.msra.mxu0 0.0
    %94 = vmatprep.subr.mxu0 0.0
    %95 = vmatpush1.msra.mxu0 0.0
    %96 = vmatprep.subr.mxu0 0.0
    %97 = vmatpush1.msra.mxu0 0.0
    %98 = vmatprep.subr.mxu0 0.0
    %99 = vmatpush1.msra.mxu0 0.0
    %100 = vmatprep.subr.mxu0 0.0
    %101 = vmatpush1.msra.mxu0 0.0
    %102 = vmatprep.subr.mxu0 0.0
    %103 = vmatpush1.msra.mxu0 0.0
    %104 = vmatprep.subr.mxu0 0.0
    %105 = vmatpush1.msra.mxu0 %v68
    %106 = vmatprep.subr.mxu0 0.0
    %107 = vmatpush1.msra.mxu0 %v67
    %108 = vmatprep.subr.mxu0 0.0
    %109 = vmatpush2.msra.mxu0 0.0
    %110 = vmatprep.subr.mxu0 0.0
    %111 = vmatpush2.msra.mxu0 0.0
    %112 = vmatprep.subr.mxu0 0.0
    %113 = vmatpush2.msra.mxu0 0.0
    %114 = vmatprep.subr.mxu0 0.0
    %115 = vmatpush2.msra.mxu0 0.0
    %116 = vmatprep.subr.mxu0 0.0
    %117 = vmatpush2.msra.mxu0 0.0
    %118 = vmatprep.subr.mxu0 0.0
    %119 = vmatpush2.msra.mxu0 0.0
    %120 = vmatprep.subr.mxu0 0.0
    %121 = vmatpush2.msra.mxu0 0.0
    %122 = vmatprep.subr.mxu0 0.0
    %123 = vmatpush2.msra.mxu0 0.0
    %124 = vmatprep.subr.mxu0 0.0
    %125 = vmatpush2.msra.mxu0 0.0
    %126 = vmatprep.subr.mxu0 0.0
    %127 = vmatpush2.msra.mxu0 0.0
    %128 = vmatprep.subr.mxu0 0.0
    %129 = vmatpush2.msra.mxu0 0.0
    %130 = vmatprep.subr.mxu0 0.0
    %131 = vmatpush2.msra.mxu0 0.0
    %132 = vmatprep.subr.mxu0 0.0
    %133 = vmatpush2.msra.mxu0 0.0
    %134 = vmatprep.subr.mxu0 0.0
    %135 = vmatpush2.msra.mxu0 0.0
    %136 = vmatprep.subr.mxu0 0.0
    %137 = vmatpush2.msra.mxu0 0.0
    %138 = vmatprep.subr.mxu0 0.0
    %139 = vmatpush2.msra.mxu0 0.0
    %140 = vmatprep.mubr.f32.mxu0 0.0
    %141 = vmatmul.mubr.f32.gmra.mxu0 %v71
    %v142 = vpop.f32.mrf.mxu0
    %v143 = vadd.f32 0.0, %v142
    %v144 = vpop.f32.mrf.mxu0
    %145 = vmatprep.mubr.f32.mxu0 0.0
    %146 = vmatmul.mubr.f32.gmra.mxu0 %v74
    %v147 = vpop.f32.mrf.mxu0
    %v148 = vadd.f32 0.0, %v147
    %v149 = vpop.f32.mrf.mxu0
    %150 = vdwg.mxu0
    %v151 = vld [vmem:[%s2] sm:$0x1]
    %v152 = vld [vmem:[%s3] sm:$0x1]
    %vm153 = vcmask 261120
    %v154 = vsel %vm153, %v143, 0.0
    %155 = vadd.xlane.f32.xlu0 %v154
    %v156 = vpop.xlane.xlu0 %155
    %v157 = vsel %vm153, %v148, 0.0
    %158 = vadd.xlane.f32.xlu0 %v157
    %v159 = vpop.xlane.xlu0 %158
    %v160 = vrcp.pop 32.0
    %v161 = vmul.f32 %v156, %v160
    %v162 = vmul.f32 %v159, %v160
    %v163 = vsub.f32 %v143, %v161
    %v164 = vsub.f32 %v148, %v162
    %v165 = vmul.f32 %v163, %v163
    %v166 = vmul.f32 %v164, %v164
    %v167 = vsel %vm153, %v165, 0.0
    %168 = vadd.xlane.f32.xlu0 %v167
    %v169 = vpop.xlane.xlu0 %168
    %v170 = vsel %vm153, %v166, 0.0
    %171 = vadd.xlane.f32.xlu0 %v170
    %v172 = vpop.xlane.xlu0 %171
    %v173 = vmul.f32 %v169, %v160
    %v174 = vmul.f32 %v172, %v160
    %v175 = vadd.f32 %v173, 1e-05
    %v176 = vadd.f32 %v174, 1e-05
    %v177 = vrsqrt.pop %v175
    %v178 = vrsqrt.pop %v176
    %v179 = vmul.f32 %v163, %v177
    %v180 = vmul.f32 %v164, %v178
    %v182 = vlaneseq
    %v183 = vshrl.u32 %v182, 7
    %v184 = vsub.s32 0, %v183
    %v185 = vrot.slane %v151, %v184
    %v187 = vmul.f32 %v179, %v185
    %v188 = vmul.f32 %v180, %v185
    %v190 = vlaneseq
    %v191 = vshrl.u32 %v190, 7
    %v192 = vsub.s32 0, %v191
    %v193 = vrot.slane %v152, %v192
    %v195 = vadd.f32 %v187, %v193
    %v196 = vadd.f32 %v188, %v193
    %197 = vst.msk [vmem:[#allocation8] sm:$0xff] %vm153, %v195
    %198 = vst.msk [vmem:[#allocation8 + $0x8] sm:$0xff] %vm153, %v196
    %v199 = vld [vmem:[#allocation7] sm:$0xff]
    %v200 = vld [vmem:[#allocation7 + $0x8] sm:$0xff]
    %v201 = vld [vmem:[#allocation7 + $0x10] sm:$0xff]
    %v202 = vld [vmem:[#allocation7 + $0x18] sm:$0xff]
    %v204 = vsel %vm153, %v195, 0
    %v207 = vsel %vm153, %v196, 0
    %209 = vmatprep.subr.mxu0 0.0
    %210 = vmatpush1.msra.mxu0 0.0
    %211 = vmatprep.subr.mxu0 0.0
    %212 = vmatpush1.msra.mxu0 0.0
    %213 = vmatprep.subr.mxu0 0.0
    %214 = vmatpush1.msra.mxu0 0.0
    %215 = vmatprep.subr.mxu0 0.0
    %216 = vmatpush1.msra.mxu0 0.0
    %217 = vmatprep.subr.mxu0 0.0
    %218 = vmatpush1.msra.mxu0 0.0
    %219 = vmatprep.subr.mxu0 0.0
    %220 = vmatpush1.msra.mxu0 0.0
    %221 = vmatprep.subr.mxu0 0.0
    %222 = vmatpush1.msra.mxu0 0.0
    %223 = vmatprep.subr.mxu0 0.0
    %224 = vmatpush1.msra.mxu0 0.0
    %225 = vmatprep.subr.mxu0 0.0
    %226 = vmatpush1.msra.mxu0 0.0
    %227 = vmatprep.subr.mxu0 0.0
    %228 = vmatpush1.msra.mxu0 0.0
    %229 = vmatprep.subr.mxu0 0.0
    %230 = vmatpush1.msra.mxu0 0.0
    %231 = vmatprep.subr.mxu0 0.0
    %232 = vmatpush1.msra.mxu0 0.0
    %233 = vmatprep.subr.mxu0 0.0
    %234 = vmatpush1.msra.mxu0 %v202
    %235 = vmatprep.subr.mxu0 0.0
    %236 = vmatpush1.msra.mxu0 %v201
    %237 = vmatprep.subr.mxu0 0.0
    %238 = vmatpush1.msra.mxu0 %v200
    %239 = vmatprep.subr.mxu0 0.0
    %240 = vmatpush1.msra.mxu0 %v199
    %241 = vmatprep.subr.mxu0 0.0
    %242 = vmatpush2.msra.mxu0 0.0
    %243 = vmatprep.subr.mxu0 0.0
    %244 = vmatpush2.msra.mxu0 0.0
    %245 = vmatprep.subr.mxu0 0.0
    %246 = vmatpush2.msra.mxu0 0.0
    %247 = vmatprep.subr.mxu0 0.0
    %248 = vmatpush2.msra.mxu0 0.0
    %249 = vmatprep.subr.mxu0 0.0
    %250 = vmatpush2.msra.mxu0 0.0
    %251 = vmatprep.subr.mxu0 0.0
    %252 = vmatpush2.msra.mxu0 0.0
    %253 = vmatprep.subr.mxu0 0.0
    %254 = vmatpush2.msra.mxu0 0.0
    %255 = vmatprep.subr.mxu0 0.0
    %256 = vmatpush2.msra.mxu0 0.0
    %257 = vmatprep.subr.mxu0 0.0
    %258 = vmatpush2.msra.mxu0 0.0
    %259 = vmatprep.subr.mxu0 0.0
    %260 = vmatpush2.msra.mxu0 0.0
    %261 = vmatprep.subr.mxu0 0.0
    %262 = vmatpush2.msra.mxu0 0.0
    %263 = vmatprep.subr.mxu0 0.0
    %264 = vmatpush2.msra.mxu0 0.0
    %265 = vmatprep.subr.mxu0 0.0
    %266 = vmatpush2.msra.mxu0 0.0
    %267 = vmatprep.subr.mxu0 0.0
    %268 = vmatpush2.msra.mxu0 0.0
    %269 = vmatprep.subr.mxu0 0.0
    %270 = vmatpush2.msra.mxu0 0.0
    %271 = vmatprep.subr.mxu0 0.0
    %272 = vmatpush2.msra.mxu0 0.0
    %273 = vmatprep.mubr.f32.mxu0 0.0
    %274 = vmatmul.mubr.f32.gmra.mxu0 %v204
    %v275 = vpop.f32.mrf.mxu0
    %v276 = vadd.f32 0.0, %v275
    %v277 = vpop.f32.mrf.mxu0
    %278 = vmatprep.mubr.f32.mxu0 0.0
    %279 = vmatmul.mubr.f32.gmra.mxu0 %v207
    %v280 = vpop.f32.mrf.mxu0
    %v281 = vadd.f32 0.0, %v280
    %v282 = vpop.f32.mrf.mxu0
    %283 = vdwg.mxu0
    %vm284 = vcmask 523264
    %285 = vst.msk [vmem:[#allocation9] sm:$0xff] %vm284, %v276
    %286 = vst.msk [vmem:[#allocation9 + $0x8] sm:$0xff] %vm284, %v281
    // Predicated region
    $region34: #{tpu_custom_call.1} parent=1 // pred_check
      _
    $region35: #{tpu_custom_call.1} parent=1 // pred_check_branch
      %288 = sbr.rel (0) target = $region37
    $region36: #{tpu_custom_call.1} parent=1 // pred_region
      %s290 = ssub.s32 256, 256
      %291 = vsyncadd [#allocation4], %s290
      %s292 = sshll.u32 [#allocation8], 4
      %s293 = int_to_ptr.vmem [resolvable:$true] %s292
      %298 = dma.vmem_to_hbm [thread:$0]  %s293, 256, %s5, [#allocation4], 128, 128, 8
    $region37: #{tpu_custom_call.1} parent=1 // pred_fallthru
      _
    // Predicated region
    $region38: #{tpu_custom_call.1} parent=1 // pred_check
      _
    $region39: #{tpu_custom_call.1} parent=1 // pred_check_branch
      %300 = sbr.rel (0) target = $region41
    $region40: #{tpu_custom_call.1} parent=1 // pred_region
      %s302 = ssub.s32 256, 256
      %303 = vsyncadd [#allocation10], %s302
      %s304 = sshll.u32 [#allocation9], 4
      %s305 = int_to_ptr.vmem [resolvable:$true] %s304
      %310 = dma.vmem_to_hbm [thread:$0]  %s305, 256, %s6, [#allocation10], 128, 128, 8
    $region41: #{tpu_custom_call.1} parent=1 // pred_fallthru
      _
    // Predicated region
    $region42: #{tpu_custom_call.1} parent=1 // pred_check
      _
    $region43: #{tpu_custom_call.1} parent=1 // pred_check_branch
      %312 = sbr.rel (0) target = $region45
    $region44: #{tpu_custom_call.1} parent=1 // pred_region
      %313 = dma.done [#allocation4], 256
    $region45: #{tpu_custom_call.1} parent=1 // pred_fallthru
      _
    // Predicated region
    $region46: #{tpu_custom_call.1} parent=1 // pred_check
      _
    $region47: #{tpu_custom_call.1} parent=1 // pred_check_branch
      %315 = sbr.rel (0) target = $region49
    $region48: #{tpu_custom_call.1} parent=1 // pred_region
      %316 = dma.done [#allocation10], 256
    $region49: #{tpu_custom_call.1} parent=1 // pred_fallthru
      _
    %317 = vsyncpa [#allocation3], 1
    %318 = vsyncpa [#allocation6], 1
    %319 = vsyncpa [#allocation4], 1
    %320 = vsyncpa [#allocation10], 1

</llo_original>
